<compile_context>
chip_gen: v7x
topology: tpu7x:2x2x1
jax: 0.10.0
libtpu: 0.0.40
codegen_flags: <defaults>
</compile_context>

<pallas_src>
import math

import jax
import jax.numpy as jnp
from jax.experimental import pallas as pl
from jax.experimental.pallas import tpu as pltpu

NEG_SLOPE = 0.01  # torch.nn.LeakyReLU default


def _round_up(n, m):
    return ((n + m - 1) // m) * m


def time_embedding_kernel(x_ref, freq_ref, w1s_ref, w1c_ref, b1_ref,
                          w2_ref, b2_ref, o_ref):
    # Feature-major layout — batch on the lane axis:
    #   x:       (1, tb)              freq: (half_dim, 1)
    #   w1s/w1c: (hidden, half_dim)   b1:   (hidden, 1)
    #   w2:      (num_embed, hidden)  b2:   (num_embed, 1)
    angles = freq_ref[...] * x_ref[...]           # (half_dim, tb), lane-dense
    s = jnp.sin(angles)
    c = jnp.cos(angles)

    # Linear 1 with the concat([sin, cos]) folded into a split transposed weight:
    #   W1^T @ concat([sin; cos]) == W1s^T @ sin + W1c^T @ cos
    h = (jnp.dot(w1s_ref[...], s, preferred_element_type=jnp.float32)
         + jnp.dot(w1c_ref[...], c, preferred_element_type=jnp.float32)
         + b1_ref[...])                           # (hidden, tb)

    # LeakyReLU (f32 VPU op)
    h = jnp.where(h > 0, h, NEG_SLOPE * h)

    # Linear 2
    out = (jnp.dot(w2_ref[...], h, preferred_element_type=jnp.float32)
           + b2_ref[...])                         # (num_embed, tb)
    o_ref[...] = out.astype(o_ref.dtype)


def time_embedding(x, freq, w1, b1, w2, b2, *, batch_tile=4096,
                   out_dtype=jnp.float32):
    """x: (B, 1) f32 time values.  Weights stored (in_features, out_features).

    Returns (B, num_embed) in `out_dtype` (default f32; pass bf16 to halve
    HBM writeback if the consumer accepts it).
    """
    B = x.shape[0]
    half_dim = freq.shape[-1]
    hidden = w1.shape[1]          # 2 * num_embed
    num_embed = w2.shape[1]

    # One-time feature-major relayout of the parameters (done by XLA, outside
    # the kernel hot path).
    w1s_t = w1[:half_dim].T                      # (hidden, half_dim)
    w1c_t = w1[half_dim:].T                      # (hidden, half_dim)
    b1_t = b1.reshape(hidden, 1)
    w2_t = w2.T                                  # (num_embed, hidden)
    b2_t = b2.reshape(num_embed, 1)
    freq_t = freq.reshape(half_dim, 1)

    # Batch on the lane axis: pad only to a lane multiple (128), not tiles.
    Bp = _round_up(B, 128)
    xt = jnp.pad(x.reshape(1, B), ((0, 0), (0, Bp - B)))

    tb = min(_round_up(batch_tile, 128), Bp)
    grid = (pl.cdiv(Bp, tb),)

    out_t = pl.pallas_call(
        time_embedding_kernel,
        out_shape=jax.ShapeDtypeStruct((num_embed, Bp), out_dtype),
        grid=grid,
        in_specs=[
            pl.BlockSpec((1, tb), lambda i: (0, i)),                # x: tiled over batch (lanes)
            pl.BlockSpec((half_dim, 1), lambda i: (0, 0)),          # freq: resident
            pl.BlockSpec((hidden, half_dim), lambda i: (0, 0)),     # w1_sin^T: resident
            pl.BlockSpec((hidden, half_dim), lambda i: (0, 0)),     # w1_cos^T: resident
            pl.BlockSpec((hidden, 1), lambda i: (0, 0)),            # b1: resident
            pl.BlockSpec((num_embed, hidden), lambda i: (0, 0)),    # w2^T: resident
            pl.BlockSpec((num_embed, 1), lambda i: (0, 0)),         # b2: resident
        ],
        out_specs=pl.BlockSpec((num_embed, tb), lambda i: (0, i)),  # lane-dense stores
        compiler_params=pltpu.CompilerParams(
            dimension_semantics=("parallel",)),
    )(xt, freq_t, w1s_t, w1c_t, b1_t, w2_t, b2_t)

    # (num_embed, B) -> (B, num_embed) to match the PyTorch module's output.
    return out_t[:, :B].T


def make_params(num_embed, key):
    """Deterministic synthetic parameters matching the PyTorch module shapes."""
    half_dim = num_embed // 4
    assert half_dim > 1, "num_embed must be >= 8 (half_dim-1 divides)"
    # Frequencies exactly as in TimeEmbedding._gaussian_fourier_projection:
    # deterministic log(10000)/(half_dim-1)-spaced, no 2*pi, no random scale.
    emb = math.log(10000.0) / (half_dim - 1)
    freq = jnp.exp(-emb * jnp.arange(half_dim, dtype=jnp.float32)).reshape(1, half_dim)

    in1, out1 = num_embed // 2, 2 * num_embed
    in2, out2 = 2 * num_embed, num_embed
    k1, k2, k3, k4 = jax.random.split(key, 4)
    # (in, out) layout so the math is h @ W + b (equivalent to nn.Linear).
    w1 = jax.random.normal(k1, (in1, out1), jnp.float32) * (1.0 / math.sqrt(in1))
    b1 = jax.random.normal(k2, (1, out1), jnp.float32) * 0.01
    w2 = jax.random.normal(k3, (in2, out2), jnp.float32) * (1.0 / math.sqrt(in2))
    b2 = jax.random.normal(k4, (1, out2), jnp.float32) * 0.01
    return freq, w1, b1, w2, b2


def reference(x, freq, w1, b1, w2, b2):
    angles = x * freq
    emb = jnp.concatenate([jnp.sin(angles), jnp.cos(angles)], axis=-1)
    h = emb @ w1 + b1
    h = jnp.where(h > 0, h, NEG_SLOPE * h)
    return h @ w2 + b2


if __name__ == "__main__":
    num_embed = 32
    batch = 8

    key = jax.random.PRNGKey(0)
    kx, kp = jax.random.split(key)
    x = jax.random.uniform(kx, (batch, 1), jnp.float32) * 10.0  # time values
    freq, w1, b1, w2, b2 = make_params(num_embed, kp)

    out = time_embedding(x, freq, w1, b1, w2, b2)
    out = jax.block_until_ready(out)

    ref = reference(x, freq, w1, b1, w2, b2)
    assert out.shape == (batch, num_embed), out.shape
    assert jnp.allclose(out, ref, atol=1e-4, rtol=1e-4), "mismatch vs reference"

    print("KERNEL_OK")
</pallas_src>

<mosaic_0001>
module attributes {stable_mosaic.version = 11 : i64} {
  func.func @time_embedding_kernel(%arg0: i32, %arg1: memref<1x128xf32, #tpu.memory_space<vmem>>, %arg2: memref<8x1xf32, #tpu.memory_space<vmem>>, %arg3: memref<64x8xf32, #tpu.memory_space<vmem>>, %arg4: memref<64x8xf32, #tpu.memory_space<vmem>>, %arg5: memref<64x1xf32, #tpu.memory_space<vmem>>, %arg6: memref<32x64xf32, #tpu.memory_space<vmem>>, %arg7: memref<32x1xf32, #tpu.memory_space<vmem>>, %arg8: memref<32x128xf32, #tpu.memory_space<vmem>>) attributes {dimension_semantics = [#tpu.dimension_semantics<parallel>], iteration_bounds = array<i64: 1>, scalar_prefetch = 0 : i64, scratch_operands = 0 : i64, tpu.core_type = #tpu.core_type<tc>, window_params = [{transform_indices = @transform_0, window_bounds = array<i64: 1, 128>}, {pipeline_mode = #tpu.pipeline_mode<synchronous>, transform_indices = @transform_1, window_bounds = array<i64: 8, 1>}, {pipeline_mode = #tpu.pipeline_mode<synchronous>, transform_indices = @transform_2, window_bounds = array<i64: 64, 8>}, {pipeline_mode = #tpu.pipeline_mode<synchronous>, transform_indices = @transform_3, window_bounds = array<i64: 64, 8>}, {pipeline_mode = #tpu.pipeline_mode<synchronous>, transform_indices = @transform_4, window_bounds = array<i64: 64, 1>}, {pipeline_mode = #tpu.pipeline_mode<synchronous>, transform_indices = @transform_5, window_bounds = array<i64: 32, 64>}, {pipeline_mode = #tpu.pipeline_mode<synchronous>, transform_indices = @transform_6, window_bounds = array<i64: 32, 1>}, {transform_indices = @transform_7, window_bounds = array<i64: 32, 128>}]} {
    %c0 = arith.constant 0 : index
    %c0_0 = arith.constant 0 : index
    %0 = vector.load %arg2[%c0, %c0_0] : memref<8x1xf32, #tpu.memory_space<vmem>>, vector<8x1xf32>
    %c0_1 = arith.constant 0 : index
    %c0_2 = arith.constant 0 : index
    %1 = vector.load %arg1[%c0_1, %c0_2] : memref<1x128xf32, #tpu.memory_space<vmem>>, vector<1x128xf32>
    %2 = vector.broadcast %0 : vector<8x1xf32> to vector<8x128xf32>
    %3 = vector.broadcast %1 : vector<1x128xf32> to vector<8x128xf32>
    %4 = arith.mulf %2, %3 : vector<8x128xf32>
    %5 = math.sin %4 : vector<8x128xf32>
    %6 = math.cos %4 : vector<8x128xf32>
    %c0_3 = arith.constant 0 : index
    %c0_4 = arith.constant 0 : index
    %7 = vector.load %arg3[%c0_3, %c0_4] : memref<64x8xf32, #tpu.memory_space<vmem>>, vector<64x8xf32>
    %cst = arith.constant dense<0.000000e+00> : vector<64x128xf32>
    %8 = tpu.matmul %7, %5, %cst {dimension_numbers = #tpu.dot_dimension_numbers<[1], [0], [0], [1], [0, 0, 1, 1], [], []>} : vector<64x8xf32>, vector<8x128xf32>, vector<64x128xf32> -> vector<64x128xf32>
    %c0_5 = arith.constant 0 : index
    %c0_6 = arith.constant 0 : index
    %9 = vector.load %arg4[%c0_5, %c0_6] : memref<64x8xf32, #tpu.memory_space<vmem>>, vector<64x8xf32>
    %cst_7 = arith.constant dense<0.000000e+00> : vector<64x128xf32>
    %10 = tpu.matmul %9, %6, %cst_7 {dimension_numbers = #tpu.dot_dimension_numbers<[1], [0], [0], [1], [0, 0, 1, 1], [], []>} : vector<64x8xf32>, vector<8x128xf32>, vector<64x128xf32> -> vector<64x128xf32>
    %11 = arith.addf %8, %10 : vector<64x128xf32>
    %c0_8 = arith.constant 0 : index
    %c0_9 = arith.constant 0 : index
    %12 = vector.load %arg5[%c0_8, %c0_9] : memref<64x1xf32, #tpu.memory_space<vmem>>, vector<64x1xf32>
    %13 = vector.broadcast %12 : vector<64x1xf32> to vector<64x128xf32>
    %14 = arith.addf %11, %13 : vector<64x128xf32>
    %cst_10 = arith.constant 0.000000e+00 : f32
    %15 = vector.broadcast %cst_10 : f32 to vector<64x128xf32>
    %16 = arith.cmpf ogt, %14, %15 : vector<64x128xf32>
    %cst_11 = arith.constant 0.00999999977 : f32
    %17 = vector.broadcast %cst_11 : f32 to vector<64x128xf32>
    %18 = arith.mulf %17, %14 : vector<64x128xf32>
    %19 = arith.select %16, %14, %18 : vector<64x128xi1>, vector<64x128xf32>
    %c0_12 = arith.constant 0 : index
    %c0_13 = arith.constant 0 : index
    %20 = vector.load %arg6[%c0_12, %c0_13] : memref<32x64xf32, #tpu.memory_space<vmem>>, vector<32x64xf32>
    %cst_14 = arith.constant dense<0.000000e+00> : vector<32x128xf32>
    %21 = tpu.matmul %20, %19, %cst_14 {dimension_numbers = #tpu.dot_dimension_numbers<[1], [0], [0], [1], [0, 0, 1, 1], [], []>} : vector<32x64xf32>, vector<64x128xf32>, vector<32x128xf32> -> vector<32x128xf32>
    %c0_15 = arith.constant 0 : index
    %c0_16 = arith.constant 0 : index
    %22 = vector.load %arg7[%c0_15, %c0_16] : memref<32x1xf32, #tpu.memory_space<vmem>>, vector<32x1xf32>
    %23 = vector.broadcast %22 : vector<32x1xf32> to vector<32x128xf32>
    %24 = arith.addf %21, %23 : vector<32x128xf32>
    %c0_17 = arith.constant 0 : index
    %c0_18 = arith.constant 0 : index
    %25 = vector.load %arg8[%c0_17, %c0_18] : memref<32x128xf32, #tpu.memory_space<vmem>>, vector<32x128xf32>
    tpu.vector_store %arg8[%c0_17, %c0_18], %24 {strides = array<i32>} : memref<32x128xf32, #tpu.memory_space<vmem>>, vector<32x128xf32>,
    return
  }
  func.func @transform_0(%arg0: i32) -> (i32, i32) {
    %c0_i32 = arith.constant 0 : i32
    %c0_i32_0 = arith.constant 0 : i32
    return %c0_i32, %arg0 : i32, i32
  }
  func.func @transform_1(%arg0: i32) -> (i32, i32) {
    %c0_i32 = arith.constant 0 : i32
    %c0_i32_0 = arith.constant 0 : i32
    %c0_i32_1 = arith.constant 0 : i32
    return %c0_i32, %c0_i32_0 : i32, i32
  }
  func.func @transform_2(%arg0: i32) -> (i32, i32) {
    %c0_i32 = arith.constant 0 : i32
    %c0_i32_0 = arith.constant 0 : i32
    %c0_i32_1 = arith.constant 0 : i32
    return %c0_i32, %c0_i32_0 : i32, i32
  }
  func.func @transform_3(%arg0: i32) -> (i32, i32) {
    %c0_i32 = arith.constant 0 : i32
    %c0_i32_0 = arith.constant 0 : i32
    %c0_i32_1 = arith.constant 0 : i32
    return %c0_i32, %c0_i32_0 : i32, i32
  }
  func.func @transform_4(%arg0: i32) -> (i32, i32) {
    %c0_i32 = arith.constant 0 : i32
    %c0_i32_0 = arith.constant 0 : i32
    %c0_i32_1 = arith.constant 0 : i32
    return %c0_i32, %c0_i32_0 : i32, i32
  }
  func.func @transform_5(%arg0: i32) -> (i32, i32) {
    %c0_i32 = arith.constant 0 : i32
    %c0_i32_0 = arith.constant 0 : i32
    %c0_i32_1 = arith.constant 0 : i32
    return %c0_i32, %c0_i32_0 : i32, i32
  }
  func.func @transform_6(%arg0: i32) -> (i32, i32) {
    %c0_i32 = arith.constant 0 : i32
    %c0_i32_0 = arith.constant 0 : i32
    %c0_i32_1 = arith.constant 0 : i32
    return %c0_i32, %c0_i32_0 : i32, i32
  }
  func.func @transform_7(%arg0: i32) -> (i32, i32) {
    %c0_i32 = arith.constant 0 : i32
    %c0_i32_0 = arith.constant 0 : i32
    return %c0_i32, %arg0 : i32, i32
  }
}

</mosaic_0001>

<llo_original>
// kernel: tpu_custom_call.1
$region0: #{tpu_custom_call.1}
  #allocation0 [shape = 'u32[]', space=smem, size = 0x4, offset = 0x4, fixed_abs, tag = 'smem constant byte address 0x4 - core index']
  #allocation1 [shape = 'u32[144,128]{1,0:T(1,128)}', space=vmem, size = 0x12000, scoped, tag = 'internal scratch']
  %s0 = inlined_call_operand.vmem [shape: f32[1,128], index: 0, kind: input, shape index: {}]
  %s1 = inlined_call_operand.vmem [shape: f32[8,1], index: 1, kind: input, shape index: {}]
  %s2 = inlined_call_operand.vmem [shape: f32[64,8], index: 2, kind: input, shape index: {}]
  %s3 = inlined_call_operand.vmem [shape: f32[64,8], index: 3, kind: input, shape index: {}]
  %s4 = inlined_call_operand.vmem [shape: f32[64,1], index: 4, kind: input, shape index: {}]
  %s5 = inlined_call_operand.vmem [shape: f32[32,64], index: 5, kind: input, shape index: {}]
  %s6 = inlined_call_operand.vmem [shape: f32[32,1], index: 6, kind: input, shape index: {}]
  %s7 = inlined_call_operand.hbm [shape: f32[32,128], index: 7, kind: output, shape index: {}]
  %s8 = sld [smem:[#allocation0]]
  $region38: #{tpu_custom_call.1} parent=0
    _
  %s10 = ssub.s32 1, %s8
  %s11 = scalar_select 0, %s10, %s8
  $region1: #{tpu_custom_call.1} parent=0
    #allocation2 [shape = 'u8[16384]{0}', space=vmem, size = 0x4000, scoped, tag = 'output window, operand 0, single buffered']
    #allocation3 [shape = 's32[1]{0}', space=sflag, size = 0x4, scoped, tag = 'scoped memory for tpu_custom_call.1']
    %12 = vsyncpa [#allocation3], 0
    // Predicated region
    $region2: #{tpu_custom_call.1} parent=1 // pred_check
      _
    $region3: #{tpu_custom_call.1} parent=1 // pred_check_branch
      %14 = sbr.rel (0) target = $region5
    $region4: #{tpu_custom_call.1} parent=1 // pred_region
      _
    $region5: #{tpu_custom_call.1} parent=1 // pred_fallthru
      _
    // Predicated region
    $region6: #{tpu_custom_call.1} parent=1 // pred_check
      _
    $region7: #{tpu_custom_call.1} parent=1 // pred_check_branch
      %16 = sbr.rel (0) target = $region9
    $region8: #{tpu_custom_call.1} parent=1 // pred_region
      _
    $region9: #{tpu_custom_call.1} parent=1 // pred_fallthru
      _
    // Predicated region
    $region10: #{tpu_custom_call.1} parent=1 // pred_check
      _
    $region11: #{tpu_custom_call.1} parent=1 // pred_check_branch
      %18 = sbr.rel (0) target = $region13
    $region12: #{tpu_custom_call.1} parent=1 // pred_region
      _
    $region13: #{tpu_custom_call.1} parent=1 // pred_fallthru
      _
    // Predicated region
    $region14: #{tpu_custom_call.1} parent=1 // pred_check
      _
    $region15: #{tpu_custom_call.1} parent=1 // pred_check_branch
      %20 = sbr.rel (0) target = $region17
    $region16: #{tpu_custom_call.1} parent=1 // pred_region
      _
    $region17: #{tpu_custom_call.1} parent=1 // pred_fallthru
      _
    // Predicated region
    $region18: #{tpu_custom_call.1} parent=1 // pred_check
      _
    $region19: #{tpu_custom_call.1} parent=1 // pred_check_branch
      %22 = sbr.rel (0) target = $region21
    $region20: #{tpu_custom_call.1} parent=1 // pred_region
      _
    $region21: #{tpu_custom_call.1} parent=1 // pred_fallthru
      _
    // Predicated region
    $region22: #{tpu_custom_call.1} parent=1 // pred_check
      _
    $region23: #{tpu_custom_call.1} parent=1 // pred_check_branch
      %24 = sbr.rel (0) target = $region25
    $region24: #{tpu_custom_call.1} parent=1 // pred_region
      _
    $region25: #{tpu_custom_call.1} parent=1 // pred_fallthru
      _
    // Predicated region
    $region26: #{tpu_custom_call.1} parent=1 // pred_check
      _
    $region27: #{tpu_custom_call.1} parent=1 // pred_check_branch
      %26 = sbr.rel (0) target = $region29
    $region28: #{tpu_custom_call.1} parent=1 // pred_region
      _
    $region29: #{tpu_custom_call.1} parent=1 // pred_fallthru
      _
    %v27 = vld [vmem:[%s1] sm:$0xff]
    %v28 = vld [vmem:[%s0] sm:$0x1]
    %30 = vset.pattern.permute.xlu0 0
    %31 = vperm.xlu0 %30, %v27
    %v32 = vpop.permute.xlu0 %31
    %v35 = vlaneseq
    %v36 = vshrl.u32 %v35, 7
    %v37 = vsub.s32 0, %v36
    %v38 = vrot.slane %v28, %v37
    %v40 = vmul.f32 %v32, %v38
    %v41 = vand.u32 2147483647, %v40
    %vm42 = vcmp.le.f32.partialorder %v41, 0.7853982
    %vm43 = vcmp.lt.s32.totalorder %v40, 0
    %v44 = vand.u32 %v40, 2139095040
    %v45 = vshrl.u32 %v44, 23
    %v46 = vsub.s32 %v45, 127
    %v47 = vand.u32 2147483647, %v40
    %v48 = vand.u32 %v47, 8388607
    %v49 = vor.u32 %v48, 8388608
    %v50 = vsub.s32 0, %v49
    %v51 = vadd.s32 %v46, 1
    %vm52 = vcmp.gt.s32.totalorder %v51, 0
    %v53 = vsel %vm52, %v51, 0
    %v54 = vshrl.u32 %v53, 5
    %v55 = vand.u32 %v53, 31
    %v56 = vsub.s32 32, %v55
    %v57 = vshrl.u32 683565275, %v56
    %v58 = vshll.u32 683565275, %v55
    %v59 = vshrl.u32 2475754826, %v56
    %v60 = vor.u32 %v58, %v59
    %v61 = vshll.u32 2475754826, %v55
    %v62 = vshrl.u32 2131351028, %v56
    %v63 = vor.u32 %v61, %v62
    %v64 = vshll.u32 2131351028, %v55
    %v65 = vshrl.u32 2102212464, %v56
    %v66 = vor.u32 %v64, %v65
    %v67 = vshll.u32 2102212464, %v55
    %v68 = vshrl.u32 920167782, %v56
    %v69 = vor.u32 %v67, %v68
    %v70 = vshll.u32 920167782, %v55
    %v71 = vshrl.u32 1326507024, %v56
    %v72 = vor.u32 %v70, %v71
    %vm73 = vcmp.lt.s32.totalorder %v54, 1
    %vm74 = vcmp.lt.s32.totalorder %v54, 2
    %vm75 = vcmp.lt.s32.totalorder %v54, 3
    %vm76 = vcmp.lt.s32.totalorder %v54, 4
    %v77 = vsel %vm73, %v57, %v60
    %v78 = vsel %vm76, %v66, 2102212464
    %v79 = vsel %vm75, %v63, %v78
    %v80 = vsel %vm74, %v77, %v79
    %v81 = vsel %vm73, %v60, %v63
    %v82 = vsel %vm76, %v69, 920167782
    %v83 = vsel %vm75, %v66, %v82
    %v84 = vsel %vm74, %v81, %v83
    %v85 = vsel %vm73, %v63, %v66
    %v86 = vsel %vm76, %v72, 1326507024
    %v87 = vsel %vm75, %v69, %v86
    %v88 = vsel %vm74, %v85, %v87
    %v89 = vshll.u32 %v49, 8
    %v90 = vmul.u32.u64.compose %v89, %v88
    %v91 = vextract.low.u32 %v90
    %v92 = vextract.high.u32 %v90
    %v93 = vmul.u32.u64.compose %v89, %v84
    %v94 = vextract.low.u32 %v93
    %v95 = vextract.high.u32 %v93
    %v96 = vmul.u32 %v89, %v80
    %v97 = vadd.s32 %v92, %v94
    %vm98 = vc.u32 %v92, %v94
    %v99 = vadd.s32 %v95, 1
    %v100 = vsel %vm98, %v99, %v95
    %v101 = vadd.s32 %v96, %v100
    %v102 = vadd.s32 %v101, 536870912
    %v103 = vshrl.u32 %v102, 30
    %v104 = vshll.u32 %v103, 30
    %v105 = vsub.s32 %v101, %v104
    %vm106 = vcmp.lt.s32.totalorder %v105, 0
    %v107 = vsub.s32 0, %v105
    %v108 = vsel %vm106, %v107, %v105
    %v109 = vclz %v108
    %v110 = vsub.s32 %v109, 2
    %vm111 = vcmp.gt.s32.totalorder 0, %v110
    %v112 = vsel %vm111, 0, %v110
    %v113 = vsub.s32 32, %v112
    %v114 = vshll.u32 %v105, %v112
    %v115 = vshrl.u32 %v97, %v113
    %v116 = vor.u32 %v114, %v115
    %v117 = vsub.s32 4294967266, %v112
    %v118 = vadd.s32 %v117, 127
    %v119 = vshll.u32 %v118, 23
    %v120 = vor.u32 4788187, %v119
    %v121 = vand.u32 2147483647, %v120
    %v123 = vcvt.s32.f32 %v116
    %v124 = vmul.f32 %v123, %v121
    %v125 = vxor.u32 %v124, 2147483648
    %v126 = vsel %vm43, %v125, %v124
    %v127 = vsub.s32 4, %v103
    %v128 = vsel %vm43, %v127, %v103
    %v129 = vsel %vm42, %v40, %v126
    %v130 = vsel %vm42, 0, %v128
    %v131 = vcosq.f32.pop %v129
    %v132 = vsinq.f32.pop %v129
    %vm133 = vweird.f32 %v40
    %v134 = vadd.s32 %v130, 3
    %v135 = vand.u32 %v134, 3
    %vm136 = vcmp.lt.s32.totalorder %v135, 2
    %vm137 = vcmp.eq.s32.totalorder %v135, 0
    %v138 = vxor.u32 %v132, 2147483648
    %v139 = vsel %vm137, %v131, %v138
    %vm140 = vcmp.eq.s32.totalorder %v135, 2
    %v141 = vxor.u32 %v131, 2147483648
    %v142 = vsel %vm140, %v141, %v132
    %v143 = vsel %vm136, %v139, %v142
    %v144 = vsel %vm133, nan, %v143
    %v145 = vand.u32 2147483647, %v40
    %vm146 = vcmp.le.f32.partialorder %v145, 0.7853982
    %vm147 = vcmp.lt.s32.totalorder %v40, 0
    %v148 = vand.u32 %v40, 2139095040
    %v149 = vshrl.u32 %v148, 23
    %v150 = vsub.s32 %v149, 127
    %v151 = vand.u32 2147483647, %v40
    %v152 = vand.u32 %v151, 8388607
    %v153 = vor.u32 %v152, 8388608
    %v154 = vsub.s32 0, %v153
    %v155 = vadd.s32 %v150, 1
    %vm156 = vcmp.gt.s32.totalorder %v155, 0
    %v157 = vsel %vm156, %v155, 0
    %v158 = vshrl.u32 %v157, 5
    %v159 = vand.u32 %v157, 31
    %v160 = vsub.s32 32, %v159
    %v161 = vshrl.u32 683565275, %v160
    %v162 = vshll.u32 683565275, %v159
    %v163 = vshrl.u32 2475754826, %v160
    %v164 = vor.u32 %v162, %v163
    %v165 = vshll.u32 2475754826, %v159
    %v166 = vshrl.u32 2131351028, %v160
    %v167 = vor.u32 %v165, %v166
    %v168 = vshll.u32 2131351028, %v159
    %v169 = vshrl.u32 2102212464, %v160
    %v170 = vor.u32 %v168, %v169
    %v171 = vshll.u32 2102212464, %v159
    %v172 = vshrl.u32 920167782, %v160
    %v173 = vor.u32 %v171, %v172
    %v174 = vshll.u32 920167782, %v159
    %v175 = vshrl.u32 1326507024, %v160
    %v176 = vor.u32 %v174, %v175
    %vm177 = vcmp.lt.s32.totalorder %v158, 1
    %vm178 = vcmp.lt.s32.totalorder %v158, 2
    %vm179 = vcmp.lt.s32.totalorder %v158, 3
    %vm180 = vcmp.lt.s32.totalorder %v158, 4
    %v181 = vsel %vm177, %v161, %v164
    %v182 = vsel %vm180, %v170, 2102212464
    %v183 = vsel %vm179, %v167, %v182
    %v184 = vsel %vm178, %v181, %v183
    %v185 = vsel %vm177, %v164, %v167
    %v186 = vsel %vm180, %v173, 920167782
    %v187 = vsel %vm179, %v170, %v186
    %v188 = vsel %vm178, %v185, %v187
    %v189 = vsel %vm177, %v167, %v170
    %v190 = vsel %vm180, %v176, 1326507024
    %v191 = vsel %vm179, %v173, %v190
    %v192 = vsel %vm178, %v189, %v191
    %v193 = vshll.u32 %v153, 8
    %v194 = vmul.u32.u64.compose %v193, %v192
    %v195 = vextract.low.u32 %v194
    %v196 = vextract.high.u32 %v194
    %v197 = vmul.u32.u64.compose %v193, %v188
    %v198 = vextract.low.u32 %v197
    %v199 = vextract.high.u32 %v197
    %v200 = vmul.u32 %v193, %v184
    %v201 = vadd.s32 %v196, %v198
    %vm202 = vc.u32 %v196, %v198
    %v203 = vadd.s32 %v199, 1
    %v204 = vsel %vm202, %v203, %v199
    %v205 = vadd.s32 %v200, %v204
    %v206 = vadd.s32 %v205, 536870912
    %v207 = vshrl.u32 %v206, 30
    %v208 = vshll.u32 %v207, 30
    %v209 = vsub.s32 %v205, %v208
    %vm210 = vcmp.lt.s32.totalorder %v209, 0
    %v211 = vsub.s32 0, %v209
    %v212 = vsel %vm210, %v211, %v209
    %v213 = vclz %v212
    %v214 = vsub.s32 %v213, 2
    %vm215 = vcmp.gt.s32.totalorder 0, %v214
    %v216 = vsel %vm215, 0, %v214
    %v217 = vsub.s32 32, %v216
    %v218 = vshll.u32 %v209, %v216
    %v219 = vshrl.u32 %v201, %v217
    %v220 = vor.u32 %v218, %v219
    %v221 = vsub.s32 4294967266, %v216
    %v222 = vadd.s32 %v221, 127
    %v223 = vshll.u32 %v222, 23
    %v224 = vor.u32 4788187, %v223
    %v225 = vand.u32 2147483647, %v224
    %v227 = vcvt.s32.f32 %v220
    %v228 = vmul.f32 %v227, %v225
    %v229 = vxor.u32 %v228, 2147483648
    %v230 = vsel %vm147, %v229, %v228
    %v231 = vsub.s32 4, %v207
    %v232 = vsel %vm147, %v231, %v207
    %v233 = vsel %vm146, %v40, %v230
    %v234 = vsel %vm146, 0, %v232
    %v235 = vcosq.f32.pop %v233
    %v236 = vsinq.f32.pop %v233
    %vm237 = vweird.f32 %v40
    %v238 = vand.u32 %v234, 3
    %vm239 = vcmp.lt.s32.totalorder %v238, 2
    %vm240 = vcmp.eq.s32.totalorder %v238, 0
    %v241 = vxor.u32 %v236, 2147483648
    %v242 = vsel %vm240, %v235, %v241
    %vm243 = vcmp.eq.s32.totalorder %v238, 2
    %v244 = vxor.u32 %v235, 2147483648
    %v245 = vsel %vm243, %v244, %v236
    %v246 = vsel %vm239, %v242, %v245
    %v247 = vsel %vm237, nan, %v246
    %v248 = vld [vmem:[%s2] sm:$0xff]
    %v249 = vld [vmem:[%s2 + $0x8] sm:$0xff]
    %v250 = vld [vmem:[%s2 + $0x10] sm:$0xff]
    %v251 = vld [vmem:[%s2 + $0x18] sm:$0xff]
    %v252 = vld [vmem:[%s2 + $0x20] sm:$0xff]
    %v253 = vld [vmem:[%s2 + $0x28] sm:$0xff]
    %v254 = vld [vmem:[%s2 + $0x30] sm:$0xff]
    %v255 = vld [vmem:[%s2 + $0x38] sm:$0xff]
    %v256 = vld [vmem:[%s3] sm:$0xff]
    %v257 = vld [vmem:[%s3 + $0x8] sm:$0xff]
    %v258 = vld [vmem:[%s3 + $0x10] sm:$0xff]
    %v259 = vld [vmem:[%s3 + $0x18] sm:$0xff]
    %v260 = vld [vmem:[%s3 + $0x20] sm:$0xff]
    %v261 = vld [vmem:[%s3 + $0x28] sm:$0xff]
    %v262 = vld [vmem:[%s3 + $0x30] sm:$0xff]
    %v263 = vld [vmem:[%s3 + $0x38] sm:$0xff]
    %vm264 = vcmask 64512
    %v266 = vsel %vm264, %v256, 0
    %v269 = vsel %vm264, %v257, 0
    %v272 = vsel %vm264, %v258, 0
    %v275 = vsel %vm264, %v259, 0
    %v278 = vsel %vm264, %v260, 0
    %v281 = vsel %vm264, %v261, 0
    %v284 = vsel %vm264, %v262, 0
    %v287 = vsel %vm264, %v263, 0
    %289 = vmatprep.subr.mxu0 0.0
    %290 = vmatpush1.msra.mxu0 %v247
    %291 = vmatprep.subr.mxu0 0.0
    %292 = vmatpush1.msra.mxu0 0.0
    %293 = vmatprep.subr.mxu0 0.0
    %294 = vmatpush1.msra.mxu0 0.0
    %295 = vmatprep.subr.mxu0 0.0
    %296 = vmatpush1.msra.mxu0 0.0
    %297 = vmatprep.subr.mxu0 0.0
    %298 = vmatpush1.msra.mxu0 0.0
    %299 = vmatprep.subr.mxu0 0.0
    %300 = vmatpush1.msra.mxu0 0.0
    %301 = vmatprep.subr.mxu0 0.0
    %302 = vmatpush1.msra.mxu0 0.0
    %303 = vmatprep.subr.mxu0 0.0
    %304 = vmatpush1.msra.mxu0 0.0
    %305 = vmatprep.subr.mxu0 0.0
    %306 = vmatpush1.msra.mxu0 0.0
    %307 = vmatprep.subr.mxu0 0.0
    %308 = vmatpush1.msra.mxu0 0.0
    %309 = vmatprep.subr.mxu0 0.0
    %310 = vmatpush1.msra.mxu0 0.0
    %311 = vmatprep.subr.mxu0 0.0
    %312 = vmatpush1.msra.mxu0 0.0
    %313 = vmatprep.subr.mxu0 0.0
    %314 = vmatpush1.msra.mxu0 0.0
    %315 = vmatprep.subr.mxu0 0.0
    %316 = vmatpush1.msra.mxu0 0.0
    %317 = vmatprep.subr.mxu0 0.0
    %318 = vmatpush1.msra.mxu0 0.0
    %319 = vmatprep.subr.mxu0 0.0
    %320 = vmatpush1.msra.mxu0 0.0
    %321 = vmatprep.subr.mxu0 0.0
    %322 = vmatpush1.msra.mxu0 0.0
    %323 = vmatprep.subr.mxu0 0.0
    %324 = vmatpush1.msra.mxu0 0.0
    %325 = vmatprep.subr.mxu0 0.0
    %326 = vmatpush1.msra.mxu0 0.0
    %327 = vmatprep.subr.mxu0 0.0
    %328 = vmatpush1.msra.mxu0 0.0
    %329 = vmatprep.subr.mxu0 0.0
    %330 = vmatpush1.msra.mxu0 0.0
    %331 = vmatprep.subr.mxu0 0.0
    %332 = vmatpush1.msra.mxu0 0.0
    %333 = vmatprep.subr.mxu0 0.0
    %334 = vmatpush1.msra.mxu0 0.0
    %335 = vmatprep.subr.mxu0 0.0
    %336 = vmatpush1.msra.mxu0 0.0
    %337 = vmatprep.subr.mxu0 0.0
    %338 = vmatpush1.msra.mxu0 0.0
    %339 = vmatprep.subr.mxu0 0.0
    %340 = vmatpush1.msra.mxu0 0.0
    %341 = vmatprep.subr.mxu0 0.0
    %342 = vmatpush1.msra.mxu0 0.0
    %343 = vmatprep.subr.mxu0 0.0
    %344 = vmatpush1.msra.mxu0 0.0
    %345 = vmatprep.subr.mxu0 0.0
    %346 = vmatpush1.msra.mxu0 0.0
    %347 = vmatprep.subr.mxu0 0.0
    %348 = vmatpush1.msra.mxu0 0.0
    %349 = vmatprep.subr.mxu0 0.0
    %350 = vmatpush1.msra.mxu0 0.0
    %351 = vmatprep.subr.mxu0 0.0
    %352 = vmatpush1.msra.mxu0 0.0
    %353 = vmatprep.mubr.f32.mxu0 0.0
    %354 = vmatmul.mubr.f32.gmra.mrb[0].mxu0 %v266
    %v355 = vpop.f32.mrb[0].mxu0
    %v356 = vadd.f32 0.0, %v355
    %v357 = vpop.f32.mrb[0].mxu0
    %358 = vmatprep.mubr.f32.mxu0 0.0
    %359 = vmatmul.mubr.f32.gmra.mrb[0].mxu0 %v269
    %v360 = vpop.f32.mrb[0].mxu0
    %v361 = vadd.f32 0.0, %v360
    %v362 = vpop.f32.mrb[0].mxu0
    %363 = vmatprep.mubr.f32.mxu0 0.0
    %364 = vmatmul.mubr.f32.gmra.mrb[0].mxu0 %v272
    %v365 = vpop.f32.mrb[0].mxu0
    %v366 = vadd.f32 0.0, %v365
    %v367 = vpop.f32.mrb[0].mxu0
    %368 = vmatprep.mubr.f32.mxu0 0.0
    %369 = vmatmul.mubr.f32.gmra.mrb[0].mxu0 %v275
    %v370 = vpop.f32.mrb[0].mxu0
    %v371 = vadd.f32 0.0, %v370
    %v372 = vpop.f32.mrb[0].mxu0
    %373 = vmatprep.mubr.f32.mxu0 0.0
    %374 = vmatmul.mubr.f32.gmra.mrb[0].mxu0 %v278
    %v375 = vpop.f32.mrb[0].mxu0
    %v376 = vadd.f32 0.0, %v375
    %v377 = vpop.f32.mrb[0].mxu0
    %378 = vmatprep.mubr.f32.mxu0 0.0
    %379 = vmatmul.mubr.f32.gmra.mrb[0].mxu0 %v281
    %v380 = vpop.f32.mrb[0].mxu0
    %v381 = vadd.f32 0.0, %v380
    %v382 = vpop.f32.mrb[0].mxu0
    %383 = vmatprep.mubr.f32.mxu0 0.0
    %384 = vmatmul.mubr.f32.gmra.mrb[0].mxu0 %v284
    %v385 = vpop.f32.mrb[0].mxu0
    %v386 = vadd.f32 0.0, %v385
    %v387 = vpop.f32.mrb[0].mxu0
    %388 = vmatprep.mubr.f32.mxu0 0.0
    %389 = vmatmul.mubr.f32.gmra.mrb[0].mxu0 %v287
    %v390 = vpop.f32.mrb[0].mxu0
    %v391 = vadd.f32 0.0, %v390
    %v392 = vpop.f32.mrb[0].mxu0
    %393 = vdwg.mxu0
    %v395 = vsel %vm264, %v248, 0
    %v398 = vsel %vm264, %v249, 0
    %v401 = vsel %vm264, %v250, 0
    %v404 = vsel %vm264, %v251, 0
    %v407 = vsel %vm264, %v252, 0
    %v410 = vsel %vm264, %v253, 0
    %v413 = vsel %vm264, %v254, 0
    %v416 = vsel %vm264, %v255, 0
    %418 = vmatprep.subr.mxu0 0.0
    %419 = vmatpush1.msra.mxu0 %v144
    %420 = vmatprep.subr.mxu0 0.0
    %421 = vmatpush1.msra.mxu0 0.0
    %422 = vmatprep.subr.mxu0 0.0
    %423 = vmatpush1.msra.mxu0 0.0
    %424 = vmatprep.subr.mxu0 0.0
    %425 = vmatpush1.msra.mxu0 0.0
    %426 = vmatprep.subr.mxu0 0.0
    %427 = vmatpush1.msra.mxu0 0.0
    %428 = vmatprep.subr.mxu0 0.0
    %429 = vmatpush1.msra.mxu0 0.0
    %430 = vmatprep.subr.mxu0 0.0
    %431 = vmatpush1.msra.mxu0 0.0
    %432 = vmatprep.subr.mxu0 0.0
    %433 = vmatpush1.msra.mxu0 0.0
    %434 = vmatprep.subr.mxu0 0.0
    %435 = vmatpush1.msra.mxu0 0.0
    %436 = vmatprep.subr.mxu0 0.0
    %437 = vmatpush1.msra.mxu0 0.0
    %438 = vmatprep.subr.mxu0 0.0
    %439 = vmatpush1.msra.mxu0 0.0
    %440 = vmatprep.subr.mxu0 0.0
    %441 = vmatpush1.msra.mxu0 0.0
    %442 = vmatprep.subr.mxu0 0.0
    %443 = vmatpush1.msra.mxu0 0.0
    %444 = vmatprep.subr.mxu0 0.0
    %445 = vmatpush1.msra.mxu0 0.0
    %446 = vmatprep.subr.mxu0 0.0
    %447 = vmatpush1.msra.mxu0 0.0
    %448 = vmatprep.subr.mxu0 0.0
    %449 = vmatpush1.msra.mxu0 0.0
    %450 = vmatprep.subr.mxu0 0.0
    %451 = vmatpush1.msra.mxu0 0.0
    %452 = vmatprep.subr.mxu0 0.0
    %453 = vmatpush1.msra.mxu0 0.0
    %454 = vmatprep.subr.mxu0 0.0
    %455 = vmatpush1.msra.mxu0 0.0
    %456 = vmatprep.subr.mxu0 0.0
    %457 = vmatpush1.msra.mxu0 0.0
    %458 = vmatprep.subr.mxu0 0.0
    %459 = vmatpush1.msra.mxu0 0.0
    %460 = vmatprep.subr.mxu0 0.0
    %461 = vmatpush1.msra.mxu0 0.0
    %462 = vmatprep.subr.mxu0 0.0
    %463 = vmatpush1.msra.mxu0 0.0
    %464 = vmatprep.subr.mxu0 0.0
    %465 = vmatpush1.msra.mxu0 0.0
    %466 = vmatprep.subr.mxu0 0.0
    %467 = vmatpush1.msra.mxu0 0.0
    %468 = vmatprep.subr.mxu0 0.0
    %469 = vmatpush1.msra.mxu0 0.0
    %470 = vmatprep.subr.mxu0 0.0
    %471 = vmatpush1.msra.mxu0 0.0
    %472 = vmatprep.subr.mxu0 0.0
    %473 = vmatpush1.msra.mxu0 0.0
    %474 = vmatprep.subr.mxu0 0.0
    %475 = vmatpush1.msra.mxu0 0.0
    %476 = vmatprep.subr.mxu0 0.0
    %477 = vmatpush1.msra.mxu0 0.0
    %478 = vmatprep.subr.mxu0 0.0
    %479 = vmatpush1.msra.mxu0 0.0
    %480 = vmatprep.subr.mxu0 0.0
    %481 = vmatpush1.msra.mxu0 0.0
    %482 = vmatprep.mubr.f32.mxu0 0.0
    %483 = vmatmul.mubr.f32.gmra.mrb[0].mxu0 %v395
    %v484 = vpop.f32.mrb[0].mxu0
    %v485 = vadd.f32 %v356, %v484
    %v486 = vpop.f32.mrb[0].mxu0
    %487 = vmatprep.mubr.f32.mxu0 0.0
    %488 = vmatmul.mubr.f32.gmra.mrb[0].mxu0 %v398
    %v489 = vpop.f32.mrb[0].mxu0
    %v490 = vadd.f32 %v361, %v489
    %v491 = vpop.f32.mrb[0].mxu0
    %492 = vmatprep.mubr.f32.mxu0 0.0
    %493 = vmatmul.mubr.f32.gmra.mrb[0].mxu0 %v401
    %v494 = vpop.f32.mrb[0].mxu0
    %v495 = vadd.f32 %v366, %v494
    %v496 = vpop.f32.mrb[0].mxu0
    %497 = vmatprep.mubr.f32.mxu0 0.0
    %498 = vmatmul.mubr.f32.gmra.mrb[0].mxu0 %v404
    %v499 = vpop.f32.mrb[0].mxu0
    %v500 = vadd.f32 %v371, %v499
    %v501 = vpop.f32.mrb[0].mxu0
    %502 = vmatprep.mubr.f32.mxu0 0.0
    %503 = vmatmul.mubr.f32.gmra.mrb[0].mxu0 %v407
    %v504 = vpop.f32.mrb[0].mxu0
    %v505 = vadd.f32 %v376, %v504
    %v506 = vpop.f32.mrb[0].mxu0
    %507 = vmatprep.mubr.f32.mxu0 0.0
    %508 = vmatmul.mubr.f32.gmra.mrb[0].mxu0 %v410
    %v509 = vpop.f32.mrb[0].mxu0
    %v510 = vadd.f32 %v381, %v509
    %v511 = vpop.f32.mrb[0].mxu0
    %512 = vmatprep.mubr.f32.mxu0 0.0
    %513 = vmatmul.mubr.f32.gmra.mrb[0].mxu0 %v413
    %v514 = vpop.f32.mrb[0].mxu0
    %v515 = vadd.f32 %v386, %v514
    %v516 = vpop.f32.mrb[0].mxu0
    %517 = vmatprep.mubr.f32.mxu0 0.0
    %518 = vmatmul.mubr.f32.gmra.mrb[0].mxu0 %v416
    %v519 = vpop.f32.mrb[0].mxu0
    %v520 = vadd.f32 %v391, %v519
    %v521 = vpop.f32.mrb[0].mxu0
    %522 = vdwg.mxu0
    %v523 = vld [vmem:[%s4] sm:$0xff]
    %v524 = vld [vmem:[%s4 + $0x8] sm:$0xff]
    %v525 = vld [vmem:[%s4 + $0x10] sm:$0xff]
    %v526 = vld [vmem:[%s4 + $0x18] sm:$0xff]
    %v527 = vld [vmem:[%s4 + $0x20] sm:$0xff]
    %v528 = vld [vmem:[%s4 + $0x28] sm:$0xff]
    %v529 = vld [vmem:[%s4 + $0x30] sm:$0xff]
    %v530 = vld [vmem:[%s4 + $0x38] sm:$0xff]
    %532 = vset.pattern.permute.xlu0 0
    %533 = vperm.xlu0 %532, %v523
    %v534 = vpop.permute.xlu0 %533
    %537 = vset.pattern.permute.xlu0 0
    %538 = vperm.xlu0 %537, %v524
    %v539 = vpop.permute.xlu0 %538
    %542 = vset.pattern.permute.xlu0 0
    %543 = vperm.xlu0 %542, %v525
    %v544 = vpop.permute.xlu0 %543
    %547 = vset.pattern.permute.xlu0 0
    %548 = vperm.xlu0 %547, %v526
    %v549 = vpop.permute.xlu0 %548
    %552 = vset.pattern.permute.xlu0 0
    %553 = vperm.xlu0 %552, %v527
    %v554 = vpop.permute.xlu0 %553
    %557 = vset.pattern.permute.xlu0 0
    %558 = vperm.xlu0 %557, %v528
    %v559 = vpop.permute.xlu0 %558
    %562 = vset.pattern.permute.xlu0 0
    %563 = vperm.xlu0 %562, %v529
    %v564 = vpop.permute.xlu0 %563
    %567 = vset.pattern.permute.xlu0 0
    %568 = vperm.xlu0 %567, %v530
    %v569 = vpop.permute.xlu0 %568
    %v571 = vadd.f32 %v485, %v534
    %v572 = vadd.f32 %v490, %v539
    %v573 = vadd.f32 %v495, %v544
    %v574 = vadd.f32 %v500, %v549
    %v575 = vadd.f32 %v505, %v554
    %v576 = vadd.f32 %v510, %v559
    %v577 = vadd.f32 %v515, %v564
    %v578 = vadd.f32 %v520, %v569
    %vm579 = vcmp.gt.f32.partialorder %v571, 0.0
    %vm580 = vcmp.gt.f32.partialorder %v572, 0.0
    %vm581 = vcmp.gt.f32.partialorder %v573, 0.0
    %vm582 = vcmp.gt.f32.partialorder %v574, 0.0
    %vm583 = vcmp.gt.f32.partialorder %v575, 0.0
    %vm584 = vcmp.gt.f32.partialorder %v576, 0.0
    %vm585 = vcmp.gt.f32.partialorder %v577, 0.0
    %vm586 = vcmp.gt.f32.partialorder %v578, 0.0
    %v587 = vmul.f32 %v571, 0.01
    %v588 = vmul.f32 %v572, 0.01
    %v589 = vmul.f32 %v573, 0.01
    %v590 = vmul.f32 %v574, 0.01
    %v591 = vmul.f32 %v575, 0.01
    %v592 = vmul.f32 %v576, 0.01
    %v593 = vmul.f32 %v577, 0.01
    %v594 = vmul.f32 %v578, 0.01
    %v595 = vsel %vm579, %v571, %v587
    %v596 = vsel %vm580, %v572, %v588
    %v597 = vsel %vm581, %v573, %v589
    %v598 = vsel %vm582, %v574, %v590
    %v599 = vsel %vm583, %v575, %v591
    %v600 = vsel %vm584, %v576, %v592
    %v601 = vsel %vm585, %v577, %v593
    %v602 = vsel %vm586, %v578, %v594
    %v603 = vld [vmem:[%s5] sm:$0xff]
    %v604 = vld [vmem:[%s5 + $0x8] sm:$0xff]
    %v605 = vld [vmem:[%s5 + $0x10] sm:$0xff]
    %v606 = vld [vmem:[%s5 + $0x18] sm:$0xff]
    %v607 = vld [vmem:[%s6] sm:$0xff]
    %v608 = vld [vmem:[%s6 + $0x8] sm:$0xff]
    %v609 = vld [vmem:[%s6 + $0x10] sm:$0xff]
    %v610 = vld [vmem:[%s6 + $0x18] sm:$0xff]
    %612 = vset.pattern.permute.xlu0 0
    %613 = vperm.xlu0 %612, %v607
    %v614 = vpop.permute.xlu0 %613
    %617 = vset.pattern.permute.xlu0 0
    %618 = vperm.xlu0 %617, %v608
    %v619 = vpop.permute.xlu0 %618
    %622 = vset.pattern.permute.xlu0 0
    %623 = vperm.xlu0 %622, %v609
    %v624 = vpop.permute.xlu0 %623
    %627 = vset.pattern.permute.xlu0 0
    %628 = vperm.xlu0 %627, %v610
    %v629 = vpop.permute.xlu0 %628
    %vm631 = vcmask 523264
    %v633 = vsel %vm631, %v603, 0
    %v636 = vsel %vm631, %v604, 0
    %v639 = vsel %vm631, %v605, 0
    %v642 = vsel %vm631, %v606, 0
    %644 = vmatprep.subr.mxu0 0.0
    %645 = vmatpush1.msra.mxu0 %v595
    %646 = vmatprep.subr.mxu0 0.0
    %647 = vmatpush1.msra.mxu0 %v596
    %648 = vmatprep.subr.mxu0 0.0
    %649 = vmatpush1.msra.mxu0 %v597
    %650 = vmatprep.subr.mxu0 0.0
    %651 = vmatpush1.msra.mxu0 %v598
    %652 = vmatprep.subr.mxu0 0.0
    %653 = vmatpush1.msra.mxu0 %v599
    %654 = vmatprep.subr.mxu0 0.0
    %655 = vmatpush1.msra.mxu0 %v600
    %656 = vmatprep.subr.mxu0 0.0
    %657 = vmatpush1.msra.mxu0 %v601
    %658 = vmatprep.subr.mxu0 0.0
    %659 = vmatpush1.msra.mxu0 %v602
    %660 = vmatprep.subr.mxu0 0.0
    %661 = vmatpush1.msra.mxu0 0.0
    %662 = vmatprep.subr.mxu0 0.0
    %663 = vmatpush1.msra.mxu0 0.0
    %664 = vmatprep.subr.mxu0 0.0
    %665 = vmatpush1.msra.mxu0 0.0
    %666 = vmatprep.subr.mxu0 0.0
    %667 = vmatpush1.msra.mxu0 0.0
    %668 = vmatprep.subr.mxu0 0.0
    %669 = vmatpush1.msra.mxu0 0.0
    %670 = vmatprep.subr.mxu0 0.0
    %671 = vmatpush1.msra.mxu0 0.0
    %672 = vmatprep.subr.mxu0 0.0
    %673 = vmatpush1.msra.mxu0 0.0
    %674 = vmatprep.subr.mxu0 0.0
    %675 = vmatpush1.msra.mxu0 0.0
    %676 = vmatprep.subr.mxu0 0.0
    %677 = vmatpush1.msra.mxu0 0.0
    %678 = vmatprep.subr.mxu0 0.0
    %679 = vmatpush1.msra.mxu0 0.0
    %680 = vmatprep.subr.mxu0 0.0
    %681 = vmatpush1.msra.mxu0 0.0
    %682 = vmatprep.subr.mxu0 0.0
    %683 = vmatpush1.msra.mxu0 0.0
    %684 = vmatprep.subr.mxu0 0.0
    %685 = vmatpush1.msra.mxu0 0.0
    %686 = vmatprep.subr.mxu0 0.0
    %687 = vmatpush1.msra.mxu0 0.0
    %688 = vmatprep.subr.mxu0 0.0
    %689 = vmatpush1.msra.mxu0 0.0
    %690 = vmatprep.subr.mxu0 0.0
    %691 = vmatpush1.msra.mxu0 0.0
    %692 = vmatprep.subr.mxu0 0.0
    %693 = vmatpush1.msra.mxu0 0.0
    %694 = vmatprep.subr.mxu0 0.0
    %695 = vmatpush1.msra.mxu0 0.0
    %696 = vmatprep.subr.mxu0 0.0
    %697 = vmatpush1.msra.mxu0 0.0
    %698 = vmatprep.subr.mxu0 0.0
    %699 = vmatpush1.msra.mxu0 0.0
    %700 = vmatprep.subr.mxu0 0.0
    %701 = vmatpush1.msra.mxu0 0.0
    %702 = vmatprep.subr.mxu0 0.0
    %703 = vmatpush1.msra.mxu0 0.0
    %704 = vmatprep.subr.mxu0 0.0
    %705 = vmatpush1.msra.mxu0 0.0
    %706 = vmatprep.subr.mxu0 0.0
    %707 = vmatpush1.msra.mxu0 0.0
    %708 = vmatprep.mubr.f32.mxu0 0.0
    %709 = vmatmul.mubr.f32.gmra.mrb[0].mxu0 %v633
    %v710 = vpop.f32.mrb[0].mxu0
    %v711 = vadd.f32 %v614, %v710
    %v712 = vpop.f32.mrb[0].mxu0
    %713 = vmatprep.mubr.f32.mxu0 0.0
    %714 = vmatmul.mubr.f32.gmra.mrb[0].mxu0 %v636
    %v715 = vpop.f32.mrb[0].mxu0
    %v716 = vadd.f32 %v619, %v715
    %v717 = vpop.f32.mrb[0].mxu0
    %718 = vmatprep.mubr.f32.mxu0 0.0
    %719 = vmatmul.mubr.f32.gmra.mrb[0].mxu0 %v639
    %v720 = vpop.f32.mrb[0].mxu0
    %v721 = vadd.f32 %v624, %v720
    %v722 = vpop.f32.mrb[0].mxu0
    %723 = vmatprep.mubr.f32.mxu0 0.0
    %724 = vmatmul.mubr.f32.gmra.mrb[0].mxu0 %v642
    %v725 = vpop.f32.mrb[0].mxu0
    %v726 = vadd.f32 %v629, %v725
    %v727 = vpop.f32.mrb[0].mxu0
    %728 = vdwg.mxu0
    %729 = vst [vmem:[#allocation2] sm:$0xff] %v711
    %730 = vst [vmem:[#allocation2 + $0x8] sm:$0xff] %v716
    %731 = vst [vmem:[#allocation2 + $0x10] sm:$0xff] %v721
    %732 = vst [vmem:[#allocation2 + $0x18] sm:$0xff] %v726
    // Predicated region
    $region30: #{tpu_custom_call.1} parent=1 // pred_check
      _
    $region31: #{tpu_custom_call.1} parent=1 // pred_check_branch
      %734 = sbr.rel (0) target = $region33
    $region32: #{tpu_custom_call.1} parent=1 // pred_region
      %s736 = ssub.s32 512, 512
      %737 = vsyncadd [#allocation3], %s736
      %s738 = sshll.u32 [#allocation2], 4
      %s739 = int_to_ptr.vmem [resolvable:$true] %s738
      %744 = dma.vmem_to_hbm [thread:$0]  %s739, 512, %s7, [#allocation3], 128, 128, 8
    $region33: #{tpu_custom_call.1} parent=1 // pred_fallthru
      _
    // Predicated region
    $region34: #{tpu_custom_call.1} parent=1 // pred_check
      _
    $region35: #{tpu_custom_call.1} parent=1 // pred_check_branch
      %746 = sbr.rel (0) target = $region37
    $region36: #{tpu_custom_call.1} parent=1 // pred_region
      %747 = dma.done [#allocation3], 512
    $region37: #{tpu_custom_call.1} parent=1 // pred_fallthru
      _
    %748 = vsyncpa [#allocation3], 1

</llo_original>
